<compile_context>
chip_gen: v5e
topology: v5e:2x2
jax: 0.10.0
libtpu: 0.0.40
codegen_flags: <defaults>
</compile_context>

<pallas_src>
from functools import partial

import jax
import jax.numpy as jnp
from jax.experimental import pallas as pl
from jax.experimental.pallas import tpu as pltpu

_LANE = 128
_SUBLANE = 8


def _cdiv(a, b):
    return -(-a // b)


def _round_up(v, m):
    return _cdiv(v, m) * m


def _vmem_capacity_bytes():
    try:
        cap = getattr(pltpu.get_tpu_info(), "vmem_capacity_bytes", None)
        if cap:
            return int(cap)
    except Exception:
        pass
    return 64 << 20  # conservative fallback (v7x physical VMEM per TensorCore)


def _pick_tiles(n_rows, hw, itemsize, max_block_bytes):
    """Pick (row_tile, lane_tile) for a (n_rows, hw) array.

    lane_tile is a multiple of 128 (or the full hw) and row_tile a multiple of
    8 (or the full n_rows), so every BlockSpec satisfies the (8,128) rule.
    Block bytes stay <= max_block_bytes.
    """
    if hw <= _LANE:
        t_hw = hw
    else:
        lane_cap = max(_LANE,
                       (max_block_bytes // (_SUBLANE * itemsize)) // _LANE * _LANE)
        if hw % _LANE == 0:
            if hw <= lane_cap:
                t_hw = hw
            else:
                t_hw = _LANE
                for cand in range(2 * _LANE, lane_cap + 1, _LANE):
                    if hw % cand == 0:
                        t_hw = cand
        else:
            t_hw = min(_round_up(hw, _LANE), lane_cap)
            if t_hw >= hw:
                t_hw = hw  # single full-extent lane block, no padding needed
    rows_per_block = max(_SUBLANE, max_block_bytes // (t_hw * itemsize))
    if rows_per_block >= n_rows:
        tr = n_rows
    else:
        tr = max(_SUBLANE, rows_per_block // _SUBLANE * _SUBLANE)
    return tr, t_hw


# ---------------------------------------------------------------------------
# Pass 1: per-row sum / sum-of-squares (reduction kernel)
# ---------------------------------------------------------------------------

def _bn_stats(x2, *, tr, t_hw, vmem_limit):
    """x2: (R, HW) -> (sum, sumsq), each (n_split, R, 1) float32 partials."""
    R, HW = x2.shape
    ni = _cdiv(R, tr)
    nj = _cdiv(HW, t_hw)
    # When the row axis has a single block, split the spatial tiles into two
    # "parallel" halves so both v7x TensorCores work on the reduction.
    n_split = 2 if (ni == 1 and nj >= 2) else 1
    nj_s = _cdiv(nj, n_split)
    need_mask = (HW % t_hw != 0) or (n_split * nj_s != nj)
    itemsize = jnp.dtype(x2.dtype).itemsize

    def kernel(x_ref, sum_ref, sq_ref):
        j = pl.program_id(2)

        @pl.when(j == 0)
        def _():
            sum_ref[...] = jnp.zeros_like(sum_ref)
            sq_ref[...] = jnp.zeros_like(sq_ref)

        x = x_ref[...].astype(jnp.float32)                       # (tr, t_hw)
        if need_mask:
            jg = pl.program_id(0) * nj_s + j                     # global lane-block idx
            col = jax.lax.broadcasted_iota(jnp.int32, x.shape, 1) + jg * t_hw
            x = jnp.where(col < HW, x, 0.0)
        sum_ref[...] += jnp.sum(x, axis=1, keepdims=True)        # (tr, 1)
        sq_ref[...] += jnp.sum(x * x, axis=1, keepdims=True)

    def x_map(s, i, j):
        # Clamp: with an odd spatial-block count split across cores the last
        # block of split 1 is out of range; the in-kernel mask zeroes it.
        return (i, jnp.minimum(s * nj_s + j, nj - 1))

    cost = pl.CostEstimate(
        flops=3 * R * HW, transcendentals=0,
        bytes_accessed=R * HW * itemsize + 2 * n_split * R * 4)

    return pl.pallas_call(
        kernel,
        out_shape=(jax.ShapeDtypeStruct((n_split, R, 1), jnp.float32),
                   jax.ShapeDtypeStruct((n_split, R, 1), jnp.float32)),
        grid_spec=pltpu.PrefetchScalarGridSpec(
            num_scalar_prefetch=0,
            grid=(n_split, ni, nj_s),
            in_specs=[pl.BlockSpec((tr, t_hw), x_map)],
            out_specs=[pl.BlockSpec((None, tr, 1), lambda s, i, j: (s, i, 0)),
                       pl.BlockSpec((None, tr, 1), lambda s, i, j: (s, i, 0))],
        ),
        compiler_params=pltpu.CompilerParams(
            dimension_semantics=("parallel", "parallel", "arbitrary"),
            vmem_limit_bytes=vmem_limit),
        cost_estimate=cost,
    )(x2)


# ---------------------------------------------------------------------------
# Pass 2: fused per-row scale-and-shift
# ---------------------------------------------------------------------------

def _bn_normalize(x2, scale_r, shift_r, *, tr, t_hw, vmem_limit):
    """y = x * scale_row + shift_row.  x2: (R, HW); scale/shift: (R, 1) f32."""
    R, HW = x2.shape
    ni = _cdiv(R, tr)
    nj = _cdiv(HW, t_hw)
    itemsize = jnp.dtype(x2.dtype).itemsize

    def kernel(x_ref, a_ref, b_ref, o_ref):
        x = x_ref[...].astype(jnp.float32)
        o_ref[...] = (x * a_ref[...] + b_ref[...]).astype(o_ref.dtype)

    cost = pl.CostEstimate(
        flops=2 * R * HW, transcendentals=0,
        bytes_accessed=2 * R * HW * itemsize + 2 * R * 4)

    return pl.pallas_call(
        kernel,
        out_shape=jax.ShapeDtypeStruct((R, HW), x2.dtype),
        grid_spec=pltpu.PrefetchScalarGridSpec(
            num_scalar_prefetch=0,
            grid=(ni, nj),
            in_specs=[pl.BlockSpec((tr, t_hw), lambda i, j: (i, j)),
                      pl.BlockSpec((tr, 1), lambda i, j: (i, 0)),
                      pl.BlockSpec((tr, 1), lambda i, j: (i, 0))],
            out_specs=pl.BlockSpec((tr, t_hw), lambda i, j: (i, j)),
        ),
        compiler_params=pltpu.CompilerParams(
            dimension_semantics=("parallel", "parallel"),
            vmem_limit_bytes=vmem_limit),
        cost_estimate=cost,
    )(x2, scale_r, shift_r)


# ---------------------------------------------------------------------------
# Fused forward (single jit: stats kernel -> tiny scalar math -> normalize)
# ---------------------------------------------------------------------------

@partial(jax.jit, static_argnames=("eps", "max_block_bytes"))
def _batchnorm2d_forward(x, gamma, beta, *, eps, max_block_bytes=None):
    N, C, H, W = x.shape
    R, HW = N * C, H * W
    x2 = x.reshape(R, HW)                        # pure reshape, no HBM transpose
    itemsize = jnp.dtype(x.dtype).itemsize

    vmem_cap = _vmem_capacity_bytes()
    if max_block_bytes is None:
        # Normalize pass keeps ~4x block (in+out double-buffered) resident;
        # budget against the actual per-core VMEM capacity with headroom.
        blk_cap = min(8 << 20, max(1 << 20, (vmem_cap - (16 << 20)) // 6))
    else:
        blk_cap = int(max_block_bytes)
    tr, t_hw = _pick_tiles(R, HW, itemsize, blk_cap)
    block_bytes = tr * t_hw * itemsize
    vmem_limit = int(min(vmem_cap, max(32 << 20, 5 * block_bytes + (12 << 20))))

    # Pass 1: per-row sums.
    s3, q3 = _bn_stats(x2, tr=tr, t_hw=t_hw, vmem_limit=vmem_limit)

    # Tiny inter-pass math, all fused inside this jit (no host round trips).
    s_c = jnp.sum(s3, axis=(0, 2)).reshape(N, C).sum(axis=0)     # (C,)
    q_c = jnp.sum(q3, axis=(0, 2)).reshape(N, C).sum(axis=0)
    cnt = float(N * HW)
    mean = s_c / cnt
    # TODO(synk): E[x^2]-mean^2 in f32 can lose precision when |mean| >> std and
    # N*H*W is very large; a Welford-style per-block merge would be more robust.
    var = jnp.maximum(q_c / cnt - mean * mean, 0.0)              # biased variance
    inv_std = jax.lax.rsqrt(var + eps)
    scale_c = gamma.astype(jnp.float32) * inv_std
    shift_c = beta.astype(jnp.float32) - mean * scale_c
    scale_r = jnp.tile(scale_c, (N,)).reshape(R, 1)              # row = n*C + c
    shift_r = jnp.tile(shift_c, (N,)).reshape(R, 1)

    # Pass 2: fused scale-and-shift.
    y2 = _bn_normalize(x2, scale_r, shift_r, tr=tr, t_hw=t_hw, vmem_limit=vmem_limit)
    return y2.reshape(N, C, H, W)


# ---------------------------------------------------------------------------
# Module
# ---------------------------------------------------------------------------

class BatchNorm:
    """JAX/Pallas port of the PyTorch BatchNorm module (nn.BatchNorm2d(c, affine)).

    Forward implements training-mode BatchNorm2d: per-channel biased batch
    statistics over (N, H, W), eps=1e-5, optional affine (gamma=1, beta=0 init).
    """

    def __init__(self, c, affine, *, eps=1e-5, dtype=jnp.float32, max_block_bytes=None):
        self.c = c
        self.affine = affine
        self.eps = float(eps)
        self.max_block_bytes = max_block_bytes
        if affine:
            self.weight = jnp.ones((c,), dtype=dtype)   # gamma
            self.bias = jnp.zeros((c,), dtype=dtype)    # beta
        else:
            self.weight = None
            self.bias = None
        # TODO(synk): running_mean/running_var tracking and eval-mode path are
        # not implemented; forward uses batch statistics (PyTorch training mode).

    def __call__(self, x):
        N, C, H, W = x.shape
        assert C == self.c
        if self.affine:
            gamma, beta = self.weight, self.bias
        else:
            gamma = jnp.ones((C,), jnp.float32)
            beta = jnp.zeros((C,), jnp.float32)
        return _batchnorm2d_forward(x, gamma, beta, eps=self.eps,
                                    max_block_bytes=self.max_block_bytes)


# ---------------------------------------------------------------------------
# Demo / correctness check
# ---------------------------------------------------------------------------

if __name__ == "__main__":
    def ref_bn(x, gamma=None, beta=None, eps=1e-5):
        mean = x.mean(axis=(0, 2, 3), keepdims=True)
        var = x.var(axis=(0, 2, 3), keepdims=True)      # biased (ddof=0)
        y = (x - mean) / jnp.sqrt(var + eps)
        if gamma is not None:
            C = x.shape[1]
            y = y * gamma.reshape(1, C, 1, 1) + beta.reshape(1, C, 1, 1)
        return y

    key = jax.random.PRNGKey(0)
    N, C, H, W = 2, 4, 16, 16
    x = jax.random.normal(key, (N, C, H, W), dtype=jnp.float32)

    # affine=True (gamma=1, beta=0 at init, like PyTorch)
    bn_affine = BatchNorm(C, affine=True)
    y = jax.block_until_ready(bn_affine(x))
    assert y.shape == (N, C, H, W), y.shape

    # affine=False
    bn_plain = BatchNorm(C, affine=False)
    y2 = jax.block_until_ready(bn_plain(x))

    y_ref = ref_bn(x)
    assert jnp.allclose(y, y_ref, atol=1e-4, rtol=1e-4), float(jnp.max(jnp.abs(y - y_ref)))
    assert jnp.allclose(y2, y_ref, atol=1e-4, rtol=1e-4), float(jnp.max(jnp.abs(y2 - y_ref)))
    assert jnp.allclose(y.mean(axis=(0, 2, 3)), 0.0, atol=1e-4)

    # Non-trivial affine parameters.
    gamma = jnp.linspace(0.5, 1.5, C, dtype=jnp.float32)
    beta = jnp.linspace(-0.2, 0.3, C, dtype=jnp.float32)
    bn_affine.weight = gamma
    bn_affine.bias = beta
    y3 = jax.block_until_ready(bn_affine(x))
    y3_ref = ref_bn(x, gamma, beta)
    assert jnp.allclose(y3, y3_ref, atol=1e-4, rtol=1e-4), float(jnp.max(jnp.abs(y3 - y3_ref)))

    # Path coverage tests (small shapes; max_block override forces tiling paths).
    extra_cases = [
        # (shape, max_block_bytes): exercises ...
        ((2, 4, 5, 5), None),            # H*W not a multiple of 128, full-extent lane block
        ((2, 16, 47, 47), 64 * 1024),    # partial (masked) lane blocks in the stats pass
        ((1, 4, 64, 64), 64 * 1024),     # single row block -> 2-way split stats reduction
        ((2, 12, 32, 32), 64 * 1024),    # partial row block (masked output writeback)
    ]
    for idx, (shape, mbb) in enumerate(extra_cases):
        xk = jax.random.normal(jax.random.PRNGKey(idx + 1), shape, dtype=jnp.float32)
        bn_t = BatchNorm(shape[1], affine=False, max_block_bytes=mbb)
        yt = jax.block_until_ready(bn_t(xk))
        yt_ref = ref_bn(xk)
        err = float(jnp.max(jnp.abs(yt - yt_ref)))
        assert jnp.allclose(yt, yt_ref, atol=1e-3, rtol=1e-3), (shape, mbb, err)

    print("KERNEL_OK")
</pallas_src>

<mosaic_0001>
module attributes {stable_mosaic.version = 11 : i64} {
  func.func @kernel(%arg0: i32, %arg1: i32, %arg2: i32, %arg3: memref<8x256xf32, #tpu.memory_space<vmem>>, %arg4: memref<1x8x1xf32, #tpu.memory_space<vmem>>, %arg5: memref<1x8x1xf32, #tpu.memory_space<vmem>>) attributes {dimension_semantics = [#tpu.dimension_semantics<parallel>, #tpu.dimension_semantics<parallel>, #tpu.dimension_semantics<arbitrary>], iteration_bounds = array<i64: 1, 1, 1>, scalar_prefetch = 0 : i64, scratch_operands = 0 : i64, tpu.core_type = #tpu.core_type<tc>, window_params = [{transform_indices = @transform_0, window_bounds = array<i64: 8, 256>}, {transform_indices = @transform_1, window_bounds = array<i64: 1, 8, 1>}, {transform_indices = @transform_2, window_bounds = array<i64: 1, 8, 1>}]} {
    %c0_i32 = arith.constant 0 : i32
    %0 = arith.cmpi eq, %arg2, %c0_i32 : i32
    %1 = arith.extui %0 : i1 to i32
    %c0_i32_0 = arith.constant 0 : i32
    %2 = arith.cmpi ne, %1, %c0_i32_0 : i32
    scf.if %2 {
      %cst_15 = arith.constant 0.000000e+00 : f32
      %21 = vector.broadcast %cst_15 : f32 to vector<8x1xf32>
      %c0_16 = arith.constant 0 : index
      %c0_17 = arith.constant 0 : index
      %c0_18 = arith.constant 0 : index
      %22 = vector.load %arg4[%c0_16, %c0_17, %c0_18] : memref<1x8x1xf32, #tpu.memory_space<vmem>>, vector<1x8x1xf32>
      %23 = vector.shape_cast %22 : vector<1x8x1xf32> to vector<8x1xf32>
      %24 = vector.shape_cast %21 : vector<8x1xf32> to vector<1x8x1xf32>
      tpu.vector_store %arg4[%c0_16, %c0_17, %c0_18], %24 {strides = array<i32>} : memref<1x8x1xf32, #tpu.memory_space<vmem>>, vector<1x8x1xf32>,
      %cst_19 = arith.constant 0.000000e+00 : f32
      %25 = vector.broadcast %cst_19 : f32 to vector<8x1xf32>
      %c0_20 = arith.constant 0 : index
      %c0_21 = arith.constant 0 : index
      %c0_22 = arith.constant 0 : index
      %26 = vector.load %arg5[%c0_20, %c0_21, %c0_22] : memref<1x8x1xf32, #tpu.memory_space<vmem>>, vector<1x8x1xf32>
      %27 = vector.shape_cast %26 : vector<1x8x1xf32> to vector<8x1xf32>
      %28 = vector.shape_cast %25 : vector<8x1xf32> to vector<1x8x1xf32>
      tpu.vector_store %arg5[%c0_20, %c0_21, %c0_22], %28 {strides = array<i32>} : memref<1x8x1xf32, #tpu.memory_space<vmem>>, vector<1x8x1xf32>,
    } else {
    }
    %c0 = arith.constant 0 : index
    %c0_1 = arith.constant 0 : index
    %3 = vector.load %arg3[%c0, %c0_1] : memref<8x256xf32, #tpu.memory_space<vmem>>, vector<8x256xf32>
    %c0_2 = arith.constant 0 : index
    %c0_3 = arith.constant 0 : index
    %c0_4 = arith.constant 0 : index
    %4 = vector.load %arg4[%c0_2, %c0_3, %c0_4] : memref<1x8x1xf32, #tpu.memory_space<vmem>>, vector<1x8x1xf32>
    %5 = vector.shape_cast %4 : vector<1x8x1xf32> to vector<8x1xf32>
    %cst = arith.constant dense<0.000000e+00> : vector<8xf32>
    %6 = vector.multi_reduction <add>, %3, %cst [1] : vector<8x256xf32> to vector<8xf32>
    %7 = vector.shape_cast %6 : vector<8xf32> to vector<8x1xf32>
    %8 = arith.addf %5, %7 : vector<8x1xf32>
    %c0_5 = arith.constant 0 : index
    %c0_6 = arith.constant 0 : index
    %c0_7 = arith.constant 0 : index
    %9 = vector.load %arg4[%c0_5, %c0_6, %c0_7] : memref<1x8x1xf32, #tpu.memory_space<vmem>>, vector<1x8x1xf32>
    %10 = vector.shape_cast %9 : vector<1x8x1xf32> to vector<8x1xf32>
    %11 = vector.shape_cast %8 : vector<8x1xf32> to vector<1x8x1xf32>
    tpu.vector_store %arg4[%c0_5, %c0_6, %c0_7], %11 {strides = array<i32>} : memref<1x8x1xf32, #tpu.memory_space<vmem>>, vector<1x8x1xf32>,
    %c0_8 = arith.constant 0 : index
    %c0_9 = arith.constant 0 : index
    %c0_10 = arith.constant 0 : index
    %12 = vector.load %arg5[%c0_8, %c0_9, %c0_10] : memref<1x8x1xf32, #tpu.memory_space<vmem>>, vector<1x8x1xf32>
    %13 = vector.shape_cast %12 : vector<1x8x1xf32> to vector<8x1xf32>
    %14 = arith.mulf %3, %3 : vector<8x256xf32>
    %cst_11 = arith.constant dense<0.000000e+00> : vector<8xf32>
    %15 = vector.multi_reduction <add>, %14, %cst_11 [1] : vector<8x256xf32> to vector<8xf32>
    %16 = vector.shape_cast %15 : vector<8xf32> to vector<8x1xf32>
    %17 = arith.addf %13, %16 : vector<8x1xf32>
    %c0_12 = arith.constant 0 : index
    %c0_13 = arith.constant 0 : index
    %c0_14 = arith.constant 0 : index
    %18 = vector.load %arg5[%c0_12, %c0_13, %c0_14] : memref<1x8x1xf32, #tpu.memory_space<vmem>>, vector<1x8x1xf32>
    %19 = vector.shape_cast %18 : vector<1x8x1xf32> to vector<8x1xf32>
    %20 = vector.shape_cast %17 : vector<8x1xf32> to vector<1x8x1xf32>
    tpu.vector_store %arg5[%c0_12, %c0_13, %c0_14], %20 {strides = array<i32>} : memref<1x8x1xf32, #tpu.memory_space<vmem>>, vector<1x8x1xf32>,
    return
  }
  func.func @transform_0(%arg0: i32, %arg1: i32, %arg2: i32) -> (i32, i32) {
    %c1_i32 = arith.constant 1 : i32
    %0 = arith.muli %arg0, %c1_i32 : i32
    %1 = arith.addi %0, %arg2 : i32
    %c0_i32 = arith.constant 0 : i32
    %2 = arith.minsi %1, %c0_i32 : i32
    %c0_i32_0 = arith.constant 0 : i32
    return %arg1, %2 : i32, i32
  }
  func.func @transform_1(%arg0: i32, %arg1: i32, %arg2: i32) -> (i32, i32, i32) {
    %c0_i32 = arith.constant 0 : i32
    %c0_i32_0 = arith.constant 0 : i32
    return %arg0, %arg1, %c0_i32 : i32, i32, i32
  }
  func.func @transform_2(%arg0: i32, %arg1: i32, %arg2: i32) -> (i32, i32, i32) {
    %c0_i32 = arith.constant 0 : i32
    %c0_i32_0 = arith.constant 0 : i32
    return %arg0, %arg1, %c0_i32 : i32, i32, i32
  }
}

module attributes {stable_mosaic.version = 11 : i64} {
  func.func @kernel(%arg0: i32, %arg1: i32, %arg2: memref<8x256xf32, #tpu.memory_space<vmem>>, %arg3: memref<8x1xf32, #tpu.memory_space<vmem>>, %arg4: memref<8x1xf32, #tpu.memory_space<vmem>>, %arg5: memref<8x256xf32, #tpu.memory_space<vmem>>) attributes {dimension_semantics = [#tpu.dimension_semantics<parallel>, #tpu.dimension_semantics<parallel>], iteration_bounds = array<i64: 1, 1>, scalar_prefetch = 0 : i64, scratch_operands = 0 : i64, tpu.core_type = #tpu.core_type<tc>, window_params = [{transform_indices = @transform_0, window_bounds = array<i64: 8, 256>}, {transform_indices = @transform_1, window_bounds = array<i64: 8, 1>}, {transform_indices = @transform_2, window_bounds = array<i64: 8, 1>}, {transform_indices = @transform_3, window_bounds = array<i64: 8, 256>}]} {
    %c0 = arith.constant 0 : index
    %c0_0 = arith.constant 0 : index
    %0 = vector.load %arg2[%c0, %c0_0] : memref<8x256xf32, #tpu.memory_space<vmem>>, vector<8x256xf32>
    %c0_1 = arith.constant 0 : index
    %c0_2 = arith.constant 0 : index
    %1 = vector.load %arg3[%c0_1, %c0_2] : memref<8x1xf32, #tpu.memory_space<vmem>>, vector<8x1xf32>
    %2 = vector.broadcast %1 : vector<8x1xf32> to vector<8x256xf32>
    %3 = arith.mulf %0, %2 : vector<8x256xf32>
    %c0_3 = arith.constant 0 : index
    %c0_4 = arith.constant 0 : index
    %4 = vector.load %arg4[%c0_3, %c0_4] : memref<8x1xf32, #tpu.memory_space<vmem>>, vector<8x1xf32>
    %5 = vector.broadcast %4 : vector<8x1xf32> to vector<8x256xf32>
    %6 = arith.addf %3, %5 : vector<8x256xf32>
    %c0_5 = arith.constant 0 : index
    %c0_6 = arith.constant 0 : index
    %7 = vector.load %arg5[%c0_5, %c0_6] : memref<8x256xf32, #tpu.memory_space<vmem>>, vector<8x256xf32>
    tpu.vector_store %arg5[%c0_5, %c0_6], %6 {strides = array<i32>} : memref<8x256xf32, #tpu.memory_space<vmem>>, vector<8x256xf32>,
    return
  }
  func.func @transform_0(%arg0: i32, %arg1: i32) -> (i32, i32) {
    %c0_i32 = arith.constant 0 : i32
    return %arg0, %arg1 : i32, i32
  }
  func.func @transform_1(%arg0: i32, %arg1: i32) -> (i32, i32) {
    %c0_i32 = arith.constant 0 : i32
    %c0_i32_0 = arith.constant 0 : i32
    return %arg0, %c0_i32 : i32, i32
  }
  func.func @transform_2(%arg0: i32, %arg1: i32) -> (i32, i32) {
    %c0_i32 = arith.constant 0 : i32
    %c0_i32_0 = arith.constant 0 : i32
    return %arg0, %c0_i32 : i32, i32
  }
  func.func @transform_3(%arg0: i32, %arg1: i32) -> (i32, i32) {
    %c0_i32 = arith.constant 0 : i32
    return %arg0, %arg1 : i32, i32
  }
}

</mosaic_0001>

<llo_original>
// kernel: tile.0
$region0: #{tile.0}
  %s0 = inlined_call_operand.vmem [shape: f32[2,4], index: 0, kind: input, shape index: {}]
  %s1 = inlined_call_operand.vmem [shape: f32[8,1], index: 1, kind: output, shape index: {}]
  $region1: #{tile.0} parent=0
    #allocation0 [shape = 'u8[4096]{0}', space=vmem, size = 0x1000, scoped, tag = 'scoped mem for input reshape']
    %s3 = ssub.s32 4, 1
    %v4 = vld [vmem:[%s0] sm:%s3]
    %5 = vst [vmem:[#allocation0] sm:%s3] %v4
    %v6 = vld [vmem:[#allocation0] sm:$0x3]
    %vm7 = vcmask 7168
    %8 = vst.msk [vmem:[%s1] ss:$4 sm:$0x3] %vm7, %v6
    %v9 = vld [vmem:[#allocation0] sm:$0x3]
    %10 = vrot.lane.b32.xlu0 %v9, 127
    %v11 = vpop.permute.xlu0 %10
    %vm12 = vcmask 7168
    %s13 = scalar_lea.vmem %s1, 1
    %14 = vst.msk [vmem:[%s13] ss:$4 sm:$0x3] %vm12, %v11
    %v15 = vld [vmem:[#allocation0] sm:$0x3]
    %16 = vrot.lane.b32.xlu0 %v15, 126
    %v17 = vpop.permute.xlu0 %16
    %vm18 = vcmask 7168
    %s19 = scalar_lea.vmem %s1, 2
    %20 = vst.msk [vmem:[%s19] ss:$4 sm:$0x3] %vm18, %v17
    %v21 = vld [vmem:[#allocation0] sm:$0x3]
    %22 = vrot.lane.b32.xlu0 %v21, 125
    %v23 = vpop.permute.xlu0 %22
    %vm24 = vcmask 7168
    %s25 = scalar_lea.vmem %s1, 3
    %26 = vst.msk [vmem:[%s25] ss:$4 sm:$0x3] %vm24, %v23

// kernel: tile.18
$region0: #{tile.18}
  #allocation0 [shape = 's32[1]{0}', space=sflag, size = 0x4, scoped, tag = 'scoped memory for tile.18']
  %s0 = inlined_call_operand.vmem [shape: f32[4], index: 0, kind: input, shape index: {}]
  %s1 = inlined_call_operand.vmem [shape: f32[2,4], index: 1, kind: output, shape index: {}]
  // Predicated region
  $region2: #{tile.18} parent=0 // pred_check
    _
  $region3: #{tile.18} parent=0 // pred_check_branch
    %3 = sbr.rel (0) target = $region5
  $region4: #{tile.18} parent=0 // pred_region
    _
  $region5: #{tile.18} parent=0 // pred_fallthru
    _
  %v4 = vld [vmem:[%s0] ss:$0 sm:$0xff]
  %5 = vst [vmem:[%s1] sm:$0x3] %v4

// kernel: _batchnorm2d_forward.3
$region0: #{_batchnorm2d_forward.3}
  #allocation0 [shape = 'u32[]', space=smem, size = 0x4, offset = 0x4, fixed_abs, tag = 'smem constant byte address 0x4 - core index']
  #allocation1 [shape = 'u32[72,128]{1,0:T(1,128)}', space=vmem, size = 0x9000, scoped, tag = 'internal scratch']
  %s0 = inlined_call_operand.vmem [shape: f32[8,256], index: 0, kind: input, shape index: {}]
  %s1 = inlined_call_operand.vmem [shape: f32[8,1], index: 1, kind: input, shape index: {}]
  %s2 = inlined_call_operand.vmem [shape: f32[8,1], index: 2, kind: input, shape index: {}]
  %s3 = inlined_call_operand.vmem [shape: f32[8,256], index: 3, kind: output, shape index: {}]
  %s4 = sld [smem:[#allocation0]]
  $region22: #{_batchnorm2d_forward.3} parent=0
    _
  %s6 = ssub.s32 1, %s4
  %s7 = scalar_select 0, %s6, %s4
  // Predicated region
  $region2: #{_batchnorm2d_forward.3} parent=0 // pred_check
    _
  $region3: #{_batchnorm2d_forward.3} parent=0 // pred_check_branch
    %9 = sbr.rel (0) target = $region5
  $region4: #{_batchnorm2d_forward.3} parent=0 // pred_region
    _
  $region5: #{_batchnorm2d_forward.3} parent=0 // pred_fallthru
    _
  // Predicated region
  $region6: #{_batchnorm2d_forward.3} parent=0 // pred_check
    _
  $region7: #{_batchnorm2d_forward.3} parent=0 // pred_check_branch
    %11 = sbr.rel (0) target = $region9
  $region8: #{_batchnorm2d_forward.3} parent=0 // pred_region
    _
  $region9: #{_batchnorm2d_forward.3} parent=0 // pred_fallthru
    _
  // Predicated region
  $region10: #{_batchnorm2d_forward.3} parent=0 // pred_check
    _
  $region11: #{_batchnorm2d_forward.3} parent=0 // pred_check_branch
    %13 = sbr.rel (0) target = $region13
  $region12: #{_batchnorm2d_forward.3} parent=0 // pred_region
    _
  $region13: #{_batchnorm2d_forward.3} parent=0 // pred_fallthru
    _
  %v14 = vld [vmem:[%s0] sm:$0xff]
  %v15 = vld [vmem:[%s0 + $0x8] sm:$0xff]
  %v16 = vld [vmem:[%s1] sm:$0xff]
  %18 = vset.pattern.permute.xlu0 0
  %19 = vperm.xlu0 %18, %v16
  %v20 = vpop.permute.xlu0 %19
  %v22 = vmul.f32 %v14, %v20
  %v23 = vmul.f32 %v15, %v20
  %v24 = vld [vmem:[%s2] sm:$0xff]
  %26 = vset.pattern.permute.xlu0 0
  %27 = vperm.xlu0 %26, %v24
  %v28 = vpop.permute.xlu0 %27
  %v30 = vadd.f32 %v22, %v28
  %v31 = vadd.f32 %v23, %v28
  %32 = vst [vmem:[%s3] sm:$0xff] %v30
  %33 = vst [vmem:[%s3 + $0x8] sm:$0xff] %v31
  // Predicated region
  $region14: #{_batchnorm2d_forward.3} parent=0 // pred_check
    _
  $region15: #{_batchnorm2d_forward.3} parent=0 // pred_check_branch
    %35 = sbr.rel (0) target = $region17
  $region16: #{_batchnorm2d_forward.3} parent=0 // pred_region
    _
  $region17: #{_batchnorm2d_forward.3} parent=0 // pred_fallthru
    _
  // Predicated region
  $region18: #{_batchnorm2d_forward.3} parent=0 // pred_check
    _
  $region19: #{_batchnorm2d_forward.3} parent=0 // pred_check_branch
    %37 = sbr.rel (0) target = $region21
  $region20: #{_batchnorm2d_forward.3} parent=0 // pred_region
    _
  $region21: #{_batchnorm2d_forward.3} parent=0 // pred_fallthru
    _

// kernel: _batchnorm2d_forward.2
$region0: #{_batchnorm2d_forward.2}
  #allocation0 [shape = 'u32[]', space=smem, size = 0x4, offset = 0x4, fixed_abs, tag = 'smem constant byte address 0x4 - core index']
  #allocation1 [shape = 'u32[72,128]{1,0:T(1,128)}', space=vmem, size = 0x9000, scoped, tag = 'internal scratch']
  %s0 = inlined_call_operand.vmem [shape: f32[8,256], index: 0, kind: input, shape index: {}]
  %s1 = inlined_call_operand.vmem [shape: f32[1,8,1], index: 1, kind: output, shape index: {0}]
  %s2 = inlined_call_operand.vmem [shape: f32[1,8,1], index: 2, kind: output, shape index: {1}]
  %3 = xla_tuple %s1, %s2
  %s4 = sld [smem:[#allocation0]]
  $region26: #{_batchnorm2d_forward.2} parent=0
    _
  %s6 = ssub.s32 1, %s4
  %s7 = scalar_select 0, %s6, %s4
  // Predicated region
  $region2: #{_batchnorm2d_forward.2} parent=0 // pred_check
    _
  $region3: #{_batchnorm2d_forward.2} parent=0 // pred_check_branch
    %9 = sbr.rel (0) target = $region5
  $region4: #{_batchnorm2d_forward.2} parent=0 // pred_region
    %s10 = sadd.s32 0, 0
    %p11 = scmp.lt.s32.totalorder %s10, 0
    %s12 = scalar_select %p11, %s10, 0
    %s13 = smul.u32 2, %s12
    %p14 = scmp.lt.s32.totalorder %s13, 1
    %s15 = scalar_select %p14, %s13, 1
    %s16 = smul.addr %s15, 8
    %s17 = scalar_lea.vmem %s0, %s16
    %s18 = sadd.s32 0, 0
    %p19 = scmp.lt.s32.totalorder %s18, 0
    %s20 = scalar_select %p19, %s18, 0
    %s21 = smul.u32 2, %s20
  $region5: #{_batchnorm2d_forward.2} parent=0 // pred_fallthru
    _
  %s22 = sadd.s32 0, 0
  %p23 = scmp.lt.s32.totalorder %s22, 0
  %s24 = scalar_select %p23, %s22, 0
  %s25 = smul.u32 2, %s24
  %p26 = scmp.lt.s32.totalorder %s25, 1
  %s27 = scalar_select %p26, %s25, 1
  %s28 = smul.addr %s27, 8
  %s29 = scalar_lea.vmem %s0, %s28
  %s30 = sadd.s32 0, 0
  %p31 = scmp.lt.s32.totalorder %s30, 0
  %s32 = scalar_select %p31, %s30, 0
  %s33 = smul.u32 2, %s32
  %p34 = scmp.lt.s32.totalorder %s33, 1
  %s35 = scalar_select %p34, %s33, 1
  %s36 = smul.addr %s35, 8
  %s37 = scalar_lea.vmem %s0, %s36
  %s38 = sadd.s32 0, 0
  %p39 = scmp.lt.s32.totalorder %s38, 0
  %s40 = scalar_select %p39, %s38, 0
  %s41 = smul.u32 2, %s40
  %p42 = scmp.eq.s32.totalorder 0, 0
  // Predicated region
  $region6: #{_batchnorm2d_forward.2} parent=0 // pred_check
    %p43 = pneg %p42
  $region7: #{_batchnorm2d_forward.2} parent=0 // pred_check_branch
    %45 = sbr.rel (%p43) target = $region9
  $region8: #{_batchnorm2d_forward.2} parent=0 // pred_region
    %vm46 = vcmask 7168
    %47 = vst.msk [vmem:[%s1] sm:$0xff] %vm46, 0.0
    %48 = vst.msk [vmem:[%s2] sm:$0xff] %vm46, 0.0
  $region9: #{_batchnorm2d_forward.2} parent=0 // pred_fallthru
    _
  %v49 = vld [vmem:[%s37] sm:$0xff]
  %v50 = vld [vmem:[%s37 + $0x8] sm:$0xff]
  %v51 = vld [vmem:[%s1] sm:$0xff]
  %v52 = vadd.f32 %v49, %v50
  %53 = vadd.xlane.f32.xlu0 %v52
  %v54 = vpop.xlane.xlu0 %53
  %v55 = vadd.f32 %v51, %v54
  %vm56 = vcmask 7168
  %57 = vst.msk [vmem:[%s1] sm:$0xff] %vm56, %v55
  %v58 = vld [vmem:[%s2] sm:$0xff]
  %v59 = vmul.f32 %v49, %v49
  %v60 = vmul.f32 %v50, %v50
  %v61 = vadd.f32 %v59, %v60
  %62 = vadd.xlane.f32.xlu0 %v61
  %v63 = vpop.xlane.xlu0 %62
  %v64 = vadd.f32 %v58, %v63
  %65 = vst.msk [vmem:[%s2] sm:$0xff] %vm56, %v64
  // Predicated region
  $region10: #{_batchnorm2d_forward.2} parent=0 // pred_check
    _
  $region11: #{_batchnorm2d_forward.2} parent=0 // pred_check_branch
    %67 = sbr.rel (0) target = $region13
  $region12: #{_batchnorm2d_forward.2} parent=0 // pred_region
    _
  $region13: #{_batchnorm2d_forward.2} parent=0 // pred_fallthru
    _
  // Predicated region
  $region14: #{_batchnorm2d_forward.2} parent=0 // pred_check
    _
  $region15: #{_batchnorm2d_forward.2} parent=0 // pred_check_branch
    %69 = sbr.rel (0) target = $region17
  $region16: #{_batchnorm2d_forward.2} parent=0 // pred_region
    _
  $region17: #{_batchnorm2d_forward.2} parent=0 // pred_fallthru
    _
  // Predicated region
  $region18: #{_batchnorm2d_forward.2} parent=0 // pred_check
    _
  $region19: #{_batchnorm2d_forward.2} parent=0 // pred_check_branch
    %71 = sbr.rel (0) target = $region21
  $region20: #{_batchnorm2d_forward.2} parent=0 // pred_region
    _
  $region21: #{_batchnorm2d_forward.2} parent=0 // pred_fallthru
    _
  // Predicated region
  $region22: #{_batchnorm2d_forward.2} parent=0 // pred_check
    _
  $region23: #{_batchnorm2d_forward.2} parent=0 // pred_check_branch
    %73 = sbr.rel (0) target = $region25
  $region24: #{_batchnorm2d_forward.2} parent=0 // pred_region
    _
  $region25: #{_batchnorm2d_forward.2} parent=0 // pred_fallthru
    _

</llo_original>
